<compile_context>
chip_gen: v6e
topology: v6e:2x2x1
jax: 0.10.0
libtpu: 0.0.40
codegen_flags: <defaults>
</compile_context>

<pallas_src>
import functools

import jax
import jax.numpy as jnp
from jax.experimental import pallas as pl
from jax.experimental.pallas import tpu as pltpu


# --------------------------------------------------------------------------- #
# Kernel
# --------------------------------------------------------------------------- #
def _transconv_phase_kernel(xm_ref, xh_ref, w_ref, b_ref, o_ref, *, fuse_taps):
    # xm_ref : (th, W+1, Cin)   input rows [m0, m0+th), right-zero-padded cols
    # xh_ref : (1,  W+1, Cin)   halo row m0+th (all-zero row when m0+th == H)
    # w_ref  : (4*Cin, 4*Cout)  fused sub-pixel weight (dh,dw,ci) -> (ph,pw,co)
    # b_ref  : (1, 1, 4*Cout)   f32 bias tiled over the 4 phases
    # o_ref  : (th, W, 4*Cout)  2x2 output block packed on the minor (lane) dim
    th, wp, cin = xm_ref.shape
    w = o_ref.shape[1]                       # == wp - 1
    co4 = o_ref.shape[2]                     # == 4 * Cout

    x0 = xm_ref[...]                                         # rows m
    x1 = jnp.concatenate([x0[1:], xh_ref[...]], axis=0)      # rows m+1 (halo)

    # The 4 taps of the 2x2 input patch feeding each 2x2 output block,
    # ordered (dh, dw) = (0,0), (0,1), (1,0), (1,1) to match w_ref rows.
    taps = (x0[:, :w, :],      # x[m,   n  ]
            x0[:, 1:, :],      # x[m,   n+1]
            x1[:, :w, :],      # x[m+1, n  ]
            x1[:, 1:, :])      # x[m+1, n+1]

    if fuse_taps:
        # Small channel counts: widen K to 4*Cin so one MXU pass fills the
        # systolic array; the lane-axis concat is affordable here.
        patch = jnp.concatenate(taps, axis=-1)                # (th, W, 4*Cin)
        if w % 8 == 0:
            # Explicit 2-D flatten (free view when W % 8 == 0) -> a single
            # (th*W, 4*Cin) @ (4*Cin, 4*Cout) matmul, never a per-row batch.
            y = jnp.dot(patch.reshape(th * w, 4 * cin), w_ref[...],
                        preferred_element_type=jnp.float32).reshape(th, w, co4)
        else:
            y = jnp.einsum("hwc,cd->hwd", patch, w_ref[...],
                           preferred_element_type=jnp.float32)
    else:
        # Large channel counts: Cin alone already fills the MXU K -> skip the
        # 4x patch copy / lane relayout and chain accumulating matmuls.
        w_all = w_ref[...]
        y = jnp.zeros((th, w, co4), jnp.float32)
        for t, xt in enumerate(taps):
            wt = w_all[t * cin:(t + 1) * cin, :]
            y = y + jnp.einsum("hwc,cd->hwd", xt, wt,
                               preferred_element_type=jnp.float32)

    # f32 bias add + cast on store (works for f32 and bf16 activations alike).
    o_ref[...] = (y + b_ref[...].astype(jnp.float32)).astype(o_ref.dtype)


# --------------------------------------------------------------------------- #
# VMEM budgeting / tile selection
# --------------------------------------------------------------------------- #
def _vmem_budgets():
    """Generation-aware VMEM budgets (per TensorCore).

    v5e/v6e: 128 MiB physical -> tile budget 64 MiB, scoped limit 96 MiB.
    v7x    :  64 MiB physical -> tile budget 32 MiB, scoped limit 48 MiB.
    """
    try:
        cap = int(pltpu.get_tpu_info().vmem_capacity_bytes)
    except Exception:
        cap = 64 * 1024 * 1024            # conservative (v7x-like) fallback
    return cap // 2, (3 * cap) // 4


def _pick_tile_h(n, h, w, cin, cout, itemsize, *, fuse_taps, vmem_budget,
                 min_grid_steps=8):
    """Largest row tile (divisor of H) whose REAL VMEM footprint fits the
    budget, keeping >= min_grid_steps grid steps (pipelining + both v7x TCs)
    and preferring an even grid total for megacore balance."""
    divisors = [d for d in range(1, h + 1) if h % d == 0]

    def tile_bytes(th):
        x_tile = th * (w + 1) * cin * itemsize
        halo = (w + 1) * cin * itemsize
        o_tile = th * w * 4 * cout * itemsize
        # streamed operands are double-buffered by the pipeline
        streamed = 2 * (x_tile + halo + o_tile)
        # weight/bias: constant index_map -> resident, single copy (bias is f32)
        resident = (4 * cin * 4 * cout) * itemsize + 4 * cout * 4
        # in-kernel temporaries at peak: x1 concat copy, im2col patch (fused)
        # or per-tap slice staging (accumulate), f32 accumulator + epilogue
        x1_copy = x_tile
        patch = (4 if fuse_taps else 2) * th * w * cin * itemsize
        acc_f32 = th * w * 4 * cout * 4
        epilogue = th * w * 4 * cout * 4
        return streamed + resident + x1_copy + patch + acc_f32 + epilogue

    fitting = [d for d in divisors if tile_bytes(d) <= vmem_budget] or [1]
    deep = [d for d in fitting if n * (h // d) >= min_grid_steps]
    cands = deep if deep else fitting
    even = [d for d in cands if (n * (h // d)) % 2 == 0]
    return max(even) if even else max(cands)


# --------------------------------------------------------------------------- #
# Wrapper
# --------------------------------------------------------------------------- #
def trans_conv_block(x, weight, bias, *, stride=2, padding=1, output_padding=1,
                     fuse_taps=None):
    """ConvTranspose2d forward. x: (N, Cin, H, W) NCHW; weight: (Cin, Cout, K, K)."""
    n, cin, h, w = x.shape
    _, cout, k, kw_ = weight.shape
    if (k, kw_, stride, padding, output_padding) != (3, 3, 2, 1, 1):
        # TODO(synk): general (k, s, p, op) via per-phase tap sets; this covers
        # the module's default configuration.
        raise NotImplementedError("only kernel=3, stride=2, pad=1, out_pad=1")
    ho, wo = 2 * h, 2 * w

    if fuse_taps is None:
        # Fuse the 4 taps into one wide-K contraction only when Cin alone is
        # too small to fill the MXU K (256 on v6e/v7x; 128 on v5e).
        fuse_taps = (4 * cin) < 256

    # --- layout glue (NCHW module API) --------------------------------------
    # TODO(synk): in an NHWC end-to-end network this input transpose and the
    # output unpack below are pure glue; expose the packed (N, H, W, 4*Cout)
    # kernel output to a pixel-shuffle-aware consumer to drop both HBM passes.
    x_nhwc = jnp.transpose(x, (0, 2, 3, 1))                        # (N, H, W, Cin)
    # +1 zero halo row/col on the high side (boundary taps x[m+1], x[n+1]).
    x_pad = jnp.pad(x_nhwc, ((0, 0), (0, 1), (0, 1), (0, 0)))      # (N, H+1, W+1, Cin)

    # Fused sub-pixel weight: (dh, dw, ci) -> (ph, pw, co); zeros for taps that
    # fall outside the 3x3 kernel.  Cast to activation dtype (bf16 halves the
    # resident weight + HBM read); accumulation stays f32 in the kernel.
    w_big = jnp.zeros((2, 2, cin, 2, 2, cout), jnp.float32)
    for dh in range(2):
        for dw in range(2):
            for ph in range(2):
                for pw in range(2):
                    kh = ph + 1 - 2 * dh
                    kw = pw + 1 - 2 * dw
                    if 0 <= kh < 3 and 0 <= kw < 3:
                        w_big = w_big.at[dh, dw, :, ph, pw, :].set(
                            weight[:, :, kh, kw].astype(jnp.float32))
    w_big = w_big.reshape(4 * cin, 4 * cout).astype(x.dtype)
    # TODO(synk): for very large channel counts on v7x (resident weight close
    # to the 32 MiB scoped default), add a Cout grid axis blocking 4*Cout.
    b_big = jnp.tile(bias.astype(jnp.float32), 4).reshape(1, 1, 4 * cout)

    itemsize = jnp.dtype(x.dtype).itemsize
    vmem_budget, vmem_limit = _vmem_budgets()
    th = _pick_tile_h(n, h, w, cin, cout, itemsize,
                      fuse_taps=fuse_taps, vmem_budget=vmem_budget)
    grid = (n, h // th)

    kernel = functools.partial(_transconv_phase_kernel, fuse_taps=fuse_taps)

    # Output minor dim = 4*Cout (packed 2x2 sub-pixel block): lane-dense /
    # unmasked stores whenever Cout is a multiple of 32 (production configs).
    out_packed = pl.pallas_call(
        kernel,
        out_shape=jax.ShapeDtypeStruct((n, h, w, 4 * cout), x.dtype),
        grid=grid,
        in_specs=[
            # main input row tile
            pl.BlockSpec((None, th, w + 1, cin), lambda b, i: (b, i, 0, 0)),
            # 1-row halo (second view of the same padded array)
            # TODO(synk): give this tiny DMA pipeline_mode=pl.Buffered(3) if a
            # trace shows it exposed against the main-tile DMA.
            pl.BlockSpec((None, 1, w + 1, cin), lambda b, i: (b, (i + 1) * th, 0, 0)),
            # fused weight / bias: constant index_map -> resident across grid
            pl.BlockSpec((4 * cin, 4 * cout), lambda b, i: (0, 0)),
            pl.BlockSpec((1, 1, 4 * cout), lambda b, i: (0, 0, 0)),
        ],
        out_specs=pl.BlockSpec((None, th, w, 4 * cout), lambda b, i: (b, i, 0, 0)),
        compiler_params=pltpu.CompilerParams(
            dimension_semantics=("parallel", "parallel"),
            vmem_limit_bytes=vmem_limit),
    )(x_pad, x_pad, w_big, b_big)

    # Unpack the 2x2 sub-pixel blocks and return NCHW (single transpose pass,
    # needed only because the module API is NCHW — see TODO above).
    out = out_packed.reshape(n, h, w, 2, 2, cout)        # (n, m, w, ph, pw, co)
    out = jnp.transpose(out, (0, 5, 1, 3, 2, 4))         # (n, co, m, ph, w, pw)
    return out.reshape(n, cout, ho, wo)


# --------------------------------------------------------------------------- #
# Reference + demo
# --------------------------------------------------------------------------- #
def _reference_conv_transpose(x, weight, bias, *, stride=2, padding=1,
                              output_padding=1):
    """Pure-JAX reference matching PyTorch ConvTranspose2d semantics."""
    cin, cout, k, _ = weight.shape
    s, p, op = stride, padding, output_padding
    wt = jnp.transpose(weight[:, :, ::-1, ::-1], (1, 0, 2, 3))     # (Cout, Cin, K, K)
    pad_lo, pad_hi = k - 1 - p, k - 1 - p + op
    y = jax.lax.conv_general_dilated(
        x, wt, window_strides=(1, 1),
        padding=((pad_lo, pad_hi), (pad_lo, pad_hi)),
        lhs_dilation=(s, s), rhs_dilation=(1, 1),
        dimension_numbers=("NCHW", "OIHW", "NCHW"))
    return y + bias[None, :, None, None]


if __name__ == "__main__":
    key = jax.random.PRNGKey(0)
    k_x, k_w, k_b = jax.random.split(key, 3)

    N, CIN, COUT, H, W, K = 2, 4, 8, 16, 16, 3

    x = jax.random.normal(k_x, (N, CIN, H, W), dtype=jnp.float32)
    # PyTorch ConvTranspose2d weight shape: (in_channels, out_channels, kH, kW)
    weight = jax.random.normal(k_w, (CIN, COUT, K, K), dtype=jnp.float32) * 0.1
    bias = jax.random.normal(k_b, (COUT,), dtype=jnp.float32) * 0.1

    y_ref = jax.block_until_ready(
        _reference_conv_transpose(x, weight, bias,
                                  stride=2, padding=1, output_padding=1))

    # 1) f32, fused-tap path (default for small channel counts).
    fwd = jax.jit(functools.partial(trans_conv_block,
                                    stride=2, padding=1, output_padding=1))
    y = jax.block_until_ready(fwd(x, weight, bias))
    assert y.shape == (N, COUT, 2 * H, 2 * W), y.shape
    max_err = float(jnp.max(jnp.abs(y - y_ref)))
    assert jnp.allclose(y, y_ref, atol=1e-4, rtol=1e-4), max_err

    # 2) f32, accumulating-matmul path (used automatically for large Cin).
    fwd_acc = jax.jit(functools.partial(trans_conv_block, fuse_taps=False))
    y_acc = jax.block_until_ready(fwd_acc(x, weight, bias))
    max_err_acc = float(jnp.max(jnp.abs(y_acc - y_ref)))
    assert jnp.allclose(y_acc, y_ref, atol=1e-4, rtol=1e-4), max_err_acc

    # 3) bf16 I/O smoke test (f32 accumulation in-kernel, cast on store).
    y_bf16 = jax.block_until_ready(
        jax.jit(trans_conv_block)(x.astype(jnp.bfloat16), weight, bias))
    assert y_bf16.dtype == jnp.bfloat16
    err_bf = jnp.abs(y_bf16.astype(jnp.float32) - y_ref)
    assert bool(jnp.all(jnp.isfinite(err_bf))) and float(jnp.max(err_bf)) < 0.5

    print("KERNEL_OK")
</pallas_src>

<mosaic_0001>
module attributes {stable_mosaic.version = 11 : i64} {
  func.func @_transconv_phase_kernel(%arg0: i32, %arg1: i32, %arg2: memref<1x4x17x4xf32, #tpu.memory_space<vmem>>, %arg3: memref<1x1x17x4xf32, #tpu.memory_space<vmem>>, %arg4: memref<16x32xf32, #tpu.memory_space<vmem>>, %arg5: memref<1x1x32xf32, #tpu.memory_space<vmem>>, %arg6: memref<1x4x16x32xf32, #tpu.memory_space<vmem>>) attributes {dimension_semantics = [#tpu.dimension_semantics<parallel>, #tpu.dimension_semantics<parallel>], iteration_bounds = array<i64: 2, 4>, scalar_prefetch = 0 : i64, scratch_operands = 0 : i64, tpu.core_type = #tpu.core_type<tc>, window_params = [{transform_indices = @transform_0, window_bounds = array<i64: 1, 4, 17, 4>}, {transform_indices = @transform_1, window_bounds = array<i64: 1, 1, 17, 4>}, {pipeline_mode = #tpu.pipeline_mode<synchronous>, transform_indices = @transform_2, window_bounds = array<i64: 16, 32>}, {pipeline_mode = #tpu.pipeline_mode<synchronous>, transform_indices = @transform_3, window_bounds = array<i64: 1, 1, 32>}, {transform_indices = @transform_4, window_bounds = array<i64: 1, 4, 16, 32>}]} {
    %c0 = arith.constant 0 : index
    %c0_0 = arith.constant 0 : index
    %c0_1 = arith.constant 0 : index
    %c0_2 = arith.constant 0 : index
    %0 = vector.load %arg2[%c0, %c0_0, %c0_1, %c0_2] : memref<1x4x17x4xf32, #tpu.memory_space<vmem>>, vector<1x4x17x4xf32>
    %1 = vector.shape_cast %0 : vector<1x4x17x4xf32> to vector<4x17x4xf32>
    %2 = vector.extract_strided_slice %1 {offsets = [1, 0, 0], sizes = [3, 17, 4], strides = [1, 1, 1]} : vector<4x17x4xf32> to vector<3x17x4xf32>
    %c0_3 = arith.constant 0 : index
    %c0_4 = arith.constant 0 : index
    %c0_5 = arith.constant 0 : index
    %c0_6 = arith.constant 0 : index
    %3 = vector.load %arg3[%c0_3, %c0_4, %c0_5, %c0_6] : memref<1x1x17x4xf32, #tpu.memory_space<vmem>>, vector<1x1x17x4xf32>
    %4 = vector.shape_cast %3 : vector<1x1x17x4xf32> to vector<1x17x4xf32>
    %5 = tpu.concatenate %2, %4 in 0 : vector<3x17x4xf32>, vector<1x17x4xf32> -> vector<4x17x4xf32>
    %6 = vector.extract_strided_slice %1 {offsets = [0, 0, 0], sizes = [4, 16, 4], strides = [1, 1, 1]} : vector<4x17x4xf32> to vector<4x16x4xf32>
    %7 = vector.extract_strided_slice %1 {offsets = [0, 1, 0], sizes = [4, 16, 4], strides = [1, 1, 1]} : vector<4x17x4xf32> to vector<4x16x4xf32>
    %8 = vector.extract_strided_slice %5 {offsets = [0, 0, 0], sizes = [4, 16, 4], strides = [1, 1, 1]} : vector<4x17x4xf32> to vector<4x16x4xf32>
    %9 = vector.extract_strided_slice %5 {offsets = [0, 1, 0], sizes = [4, 16, 4], strides = [1, 1, 1]} : vector<4x17x4xf32> to vector<4x16x4xf32>
    %10 = tpu.concatenate %6, %7, %8, %9 in 2 : vector<4x16x4xf32>, vector<4x16x4xf32>, vector<4x16x4xf32>, vector<4x16x4xf32> -> vector<4x16x16xf32>
    %11 = vector.shape_cast %10 : vector<4x16x16xf32> to vector<64x16xf32>
    %c0_7 = arith.constant 0 : index
    %c0_8 = arith.constant 0 : index
    %12 = vector.load %arg4[%c0_7, %c0_8] : memref<16x32xf32, #tpu.memory_space<vmem>>, vector<16x32xf32>
    %cst = arith.constant dense<0.000000e+00> : vector<64x32xf32>
    %13 = tpu.matmul %11, %12, %cst {dimension_numbers = #tpu.dot_dimension_numbers<[1], [0], [0], [1], [0, 0, 1, 1], [], []>} : vector<64x16xf32>, vector<16x32xf32>, vector<64x32xf32> -> vector<64x32xf32>
    %14 = vector.shape_cast %13 : vector<64x32xf32> to vector<4x16x32xf32>
    %c0_9 = arith.constant 0 : index
    %c0_10 = arith.constant 0 : index
    %c0_11 = arith.constant 0 : index
    %15 = vector.load %arg5[%c0_9, %c0_10, %c0_11] : memref<1x1x32xf32, #tpu.memory_space<vmem>>, vector<1x1x32xf32>
    %16 = vector.broadcast %15 : vector<1x1x32xf32> to vector<4x16x32xf32>
    %17 = arith.addf %14, %16 : vector<4x16x32xf32>
    %c0_12 = arith.constant 0 : index
    %c0_13 = arith.constant 0 : index
    %c0_14 = arith.constant 0 : index
    %c0_15 = arith.constant 0 : index
    %18 = vector.load %arg6[%c0_12, %c0_13, %c0_14, %c0_15] : memref<1x4x16x32xf32, #tpu.memory_space<vmem>>, vector<1x4x16x32xf32>
    %19 = vector.shape_cast %18 : vector<1x4x16x32xf32> to vector<4x16x32xf32>
    %20 = vector.shape_cast %17 : vector<4x16x32xf32> to vector<1x4x16x32xf32>
    tpu.vector_store %arg6[%c0_12, %c0_13, %c0_14, %c0_15], %20 {strides = array<i32>} : memref<1x4x16x32xf32, #tpu.memory_space<vmem>>, vector<1x4x16x32xf32>,
    return
  }
  func.func @transform_0(%arg0: i32, %arg1: i32) -> (i32, i32, i32, i32) {
    %c0_i32 = arith.constant 0 : i32
    %c0_i32_0 = arith.constant 0 : i32
    %c0_i32_1 = arith.constant 0 : i32
    return %arg0, %arg1, %c0_i32, %c0_i32_0 : i32, i32, i32, i32
  }
  func.func @transform_1(%arg0: i32, %arg1: i32) -> (i32, i32, i32, i32) {
    %c1_i32 = arith.constant 1 : i32
    %0 = arith.addi %arg1, %c1_i32 : i32
    %c4_i32 = arith.constant 4 : i32
    %1 = arith.muli %0, %c4_i32 : i32
    %c0_i32 = arith.constant 0 : i32
    %c0_i32_0 = arith.constant 0 : i32
    %c0_i32_1 = arith.constant 0 : i32
    return %arg0, %1, %c0_i32, %c0_i32_0 : i32, i32, i32, i32
  }
  func.func @transform_2(%arg0: i32, %arg1: i32) -> (i32, i32) {
    %c0_i32 = arith.constant 0 : i32
    %c0_i32_0 = arith.constant 0 : i32
    %c0_i32_1 = arith.constant 0 : i32
    return %c0_i32, %c0_i32_0 : i32, i32
  }
  func.func @transform_3(%arg0: i32, %arg1: i32) -> (i32, i32, i32) {
    %c0_i32 = arith.constant 0 : i32
    %c0_i32_0 = arith.constant 0 : i32
    %c0_i32_1 = arith.constant 0 : i32
    %c0_i32_2 = arith.constant 0 : i32
    return %c0_i32, %c0_i32_0, %c0_i32_1 : i32, i32, i32
  }
  func.func @transform_4(%arg0: i32, %arg1: i32) -> (i32, i32, i32, i32) {
    %c0_i32 = arith.constant 0 : i32
    %c0_i32_0 = arith.constant 0 : i32
    %c0_i32_1 = arith.constant 0 : i32
    return %arg0, %arg1, %c0_i32, %c0_i32_0 : i32, i32, i32, i32
  }
}

</mosaic_0001>

<llo_original>
// kernel: tile.8
$region0: #{tile.8}
  #allocation0 [shape = 's32[1]{0}', space=sflag, size = 0x4, scoped, tag = 'scoped memory for tile.8']
  %s0 = inlined_call_operand.vmem [shape: f32[8], index: 0, kind: input, shape index: {}]
  %s1 = inlined_call_operand.vmem [shape: f32[4,8], index: 1, kind: output, shape index: {}]
  // Predicated region
  $region2: #{tile.8} parent=0 // pred_check
    _
  $region3: #{tile.8} parent=0 // pred_check_branch
    %3 = sbr.rel (0) target = $region5
  $region4: #{tile.8} parent=0 // pred_region
    _
  $region5: #{tile.8} parent=0 // pred_fallthru
    _
  %v4 = vld [vmem:[%s0] ss:$0 sm:$0xff]
  %5 = vst [vmem:[%s1] sm:$0xf] %v4

// kernel: tile.9
$region0: #{tile.9}
  %s0 = inlined_call_operand.vmem [shape: f32[4,8], index: 0, kind: input, shape index: {}]
  %s1 = inlined_call_operand.vmem [shape: f32[1,1,32], index: 1, kind: output, shape index: {}]
  $region1: #{tile.9} parent=0
    #allocation0 [shape = 'u8[4096]{0}', space=vmem, size = 0x1000, scoped, tag = 'scoped mem for output reshape']
    #allocation1 [shape = 'u8[4096]{0}', space=vmem, size = 0x1000, scoped, tag = 'scoped mem for input reshape']
    %s3 = sshll.u32 1, 4
    %s4 = ssub.s32 %s3, 1
    %v5 = vld [vmem:[%s0] sm:%s4]
    %6 = vst [vmem:[#allocation1] sm:%s4] %v5
    %v7 = vld [vmem:[#allocation1] sm:$0x1]
    %vm8 = vcmask 64512
    %9 = vst.msk [vmem:[#allocation0] sm:$0x1] %vm8, %v7
    %s10 = scalar_lea.vmem [#allocation1], 3
    %v11 = vld [vmem:[%s10] sm:$0x1]
    %12 = vrot.lane.b32.xlu0 %v11, 24
    %v13 = vpop.permute.xlu0 %12
    %vm14 = vcmask 261312
    %15 = vst.msk [vmem:[#allocation0] sm:$0x1] %vm14, %v13
    %s16 = scalar_lea.vmem [#allocation1], 2
    %v17 = vld [vmem:[%s16] sm:$0x1]
    %18 = vrot.lane.b32.xlu0 %v17, 16
    %v19 = vpop.permute.xlu0 %18
    %vm20 = vcmask 195712
    %21 = vst.msk [vmem:[#allocation0] sm:$0x1] %vm20, %v19
    %s22 = scalar_lea.vmem [#allocation1], 1
    %v23 = vld [vmem:[%s22] sm:$0x1]
    %24 = vrot.lane.b32.xlu0 %v23, 8
    %v25 = vpop.permute.xlu0 %24
    %vm26 = vcmask 130112
    %27 = vst.msk [vmem:[#allocation0] sm:$0x1] %vm26, %v25
    %s29 = sshll.u32 1, 1
    %s30 = ssub.s32 %s29, 1
    %v32 = vld [vmem:[#allocation0] sm:%s30]
    %s33 = sshll.u32 1, 1
    %s34 = ssub.s32 %s33, 1
    %35 = vst [vmem:[%s1] sm:%s34] %v32

// kernel: trans_conv_block.1
$region0: #{trans_conv_block.1}
  #allocation0 [shape = 'u32[]', space=smem, size = 0x4, offset = 0x4, fixed_abs, tag = 'smem constant byte address 0x4 - core index']
  #allocation1 [shape = 'u32[144,128]{1,0:T(1,128)}', space=vmem, size = 0x12000, scoped, tag = 'internal scratch']
  %s0 = inlined_call_operand.vmem [shape: f32[2,17,17,4], index: 0, kind: input, shape index: {}, may-alias: {0,1}]
  %s1 = inlined_call_operand.vmem [shape: f32[2,17,17,4], index: 1, kind: input, shape index: {}, may-alias: {0,1}]
  %s2 = inlined_call_operand.vmem [shape: f32[16,32], index: 2, kind: input, shape index: {}]
  %s3 = inlined_call_operand.vmem [shape: f32[1,1,32], index: 3, kind: input, shape index: {}]
  %s4 = inlined_call_operand.vmem [shape: f32[2,16,16,32], index: 4, kind: output, shape index: {}]
  %s5 = sld [smem:[#allocation0]]
  $region49: #{trans_conv_block.1} parent=0
    _
  %s7 = ssub.s32 1, %s5
  %s8 = scalar_select 0, %s7, %s5
  loop: start=0, step=1, limit=10
  $region2: #{trans_conv_block.1} parent=0 // loop_pre_header
    _
  $region3: #{trans_conv_block.1} parent=0 // loop_header
    %s10 = sphi 0, %s14
    %p11 = scmp.ge.s32.totalorder %s10, 10
    %s17 = sphi 0, %s29
    %s18 = sphi 0, %s25
    %s19 = sphi 0, %s17
    %s20 = sphi 0, %s18
    %s21 = sphi 0, %s19
    %s22 = sphi 0, %s20
    %s34 = sphi 0, %s36
    %s37 = sphi 0, %s34
    %s38 = sphi 0, %s37
    %s54 = sphi 0, %s38
    %s66 = sphi 0, %s68
    %s69 = sphi 0, %s66
    %s70 = sphi 0, %s69
    %s86 = sphi 0, %s70
    %s90 = sphi 0, %s90
    %s92 = sphi 0, %s90
    %s93 = sphi 0, %s92
    %s107 = sphi 0, %s93
    %s111 = sphi 0, %s111
    %s113 = sphi 0, %s111
    %s114 = sphi 0, %s113
    %s128 = sphi 0, %s114
    %s136 = sphi 0, %s138
    %s139 = sphi 0, %s136
    %s140 = sphi 0, %s139
    %s156 = sphi 0, %s140
  $region4: #{trans_conv_block.1} parent=0 // loop_header_branch
    %13 = sbr.rel (%p11) target = $region8
  $region5: #{trans_conv_block.1} parent=0 // loop_body
    %s15 = ssub.s32 %s10, 1
    %s16 = ssub.s32 %s10, 2
    %s23 = sadd.s32 1, %s18
    %p24 = scmp.ge.s32.totalorder %s23, 4
    %s25 = scalar_select %p24, 0, %s23
    %s26 = sadd.s32 1, %s17
    %s27 = scalar_select %p24, %s26, %s17
    %p28 = scmp.ge.s32.totalorder %s27, 2
    %s29 = scalar_select %p28, 0, %s27
    %s30 = ssub.s32 %s17, %s29
    %s31 = ssub.s32 %s18, %s25
    %s32 = sor.u32 %s30, %s31
    %p33 = scmp.eq.s32.totalorder %s32, 0
    %s35 = sadd.s32 %s34, 1
    %s36 = scalar_select %p33, %s34, %s35
    %p39 = pneg %p33
    %p40 = scmp.eq.s32.totalorder %s10, 7
    %p41 = por %p39, %p40
    %p42 = scmp.ne.s32.totalorder %s34, %s37
    %p43 = scmp.eq.s32.totalorder %s10, 0
    %p44 = por %p42, %p43
    %p45 = scmp.ne.s32.totalorder %s34, %s37
    %p46 = scmp.eq.s32.totalorder %s15, 7
    %p47 = por %p45, %p46
    %p48 = scmp.ne.s32.totalorder %s37, %s38
    %p49 = scmp.eq.s32.totalorder %s15, 0
    %p50 = por %p48, %p49
    %p51 = scmp.ne.s32.totalorder %s37, %s38
    %p52 = scmp.eq.s32.totalorder %s16, 7
    %p53 = por %p51, %p52
    %p55 = scmp.ne.s32.totalorder %s38, %s54
    %p56 = scmp.eq.s32.totalorder %s16, 0
    %p57 = por %p55, %p56
    %s58 = sadd.s32 %s18, 1
    %s59 = smul.u32 %s58, 4
    %s60 = sadd.s32 %s25, 1
    %s61 = smul.u32 %s60, 4
    %s62 = ssub.s32 %s17, %s29
    %s63 = ssub.s32 %s59, %s61
    %s64 = sor.u32 %s62, %s63
    %p65 = scmp.eq.s32.totalorder %s64, 0
    %s67 = sadd.s32 %s66, 1
    %s68 = scalar_select %p65, %s66, %s67
    %p71 = pneg %p65
    %p72 = scmp.eq.s32.totalorder %s10, 7
    %p73 = por %p71, %p72
    %p74 = scmp.ne.s32.totalorder %s66, %s69
    %p75 = scmp.eq.s32.totalorder %s10, 0
    %p76 = por %p74, %p75
    %p77 = scmp.ne.s32.totalorder %s66, %s69
    %p78 = scmp.eq.s32.totalorder %s15, 7
    %p79 = por %p77, %p78
    %p80 = scmp.ne.s32.totalorder %s69, %s70
    %p81 = scmp.eq.s32.totalorder %s15, 0
    %p82 = por %p80, %p81
    %p83 = scmp.ne.s32.totalorder %s69, %s70
    %p84 = scmp.eq.s32.totalorder %s16, 7
    %p85 = por %p83, %p84
    %p87 = scmp.ne.s32.totalorder %s70, %s86
    %p88 = scmp.eq.s32.totalorder %s16, 0
    %p89 = por %p87, %p88
    %s91 = sadd.s32 %s90, 1
    %p94 = scmp.eq.s32.totalorder %s10, 7
    %p95 = scmp.ne.s32.totalorder %s90, %s92
    %p96 = scmp.eq.s32.totalorder %s10, 0
    %p97 = por %p95, %p96
    %p98 = scmp.ne.s32.totalorder %s90, %s92
    %p99 = scmp.eq.s32.totalorder %s15, 7
    %p100 = por %p98, %p99
    %p101 = scmp.ne.s32.totalorder %s92, %s93
    %p102 = scmp.eq.s32.totalorder %s15, 0
    %p103 = por %p101, %p102
    %p104 = scmp.ne.s32.totalorder %s92, %s93
    %p105 = scmp.eq.s32.totalorder %s16, 7
    %p106 = por %p104, %p105
    %p108 = scmp.ne.s32.totalorder %s93, %s107
    %p109 = scmp.eq.s32.totalorder %s16, 0
    %p110 = por %p108, %p109
    %s112 = sadd.s32 %s111, 1
    %p115 = scmp.eq.s32.totalorder %s10, 7
    %p116 = scmp.ne.s32.totalorder %s111, %s113
    %p117 = scmp.eq.s32.totalorder %s10, 0
    %p118 = por %p116, %p117
    %p119 = scmp.ne.s32.totalorder %s111, %s113
    %p120 = scmp.eq.s32.totalorder %s15, 7
    %p121 = por %p119, %p120
    %p122 = scmp.ne.s32.totalorder %s113, %s114
    %p123 = scmp.eq.s32.totalorder %s15, 0
    %p124 = por %p122, %p123
    %p125 = scmp.ne.s32.totalorder %s113, %s114
    %p126 = scmp.eq.s32.totalorder %s16, 7
    %p127 = por %p125, %p126
    %p129 = scmp.ne.s32.totalorder %s114, %s128
    %p130 = scmp.eq.s32.totalorder %s16, 0
    %p131 = por %p129, %p130
    %s132 = ssub.s32 %s17, %s29
    %s133 = ssub.s32 %s18, %s25
    %s134 = sor.u32 %s132, %s133
    %p135 = scmp.eq.s32.totalorder %s134, 0
    %s137 = sadd.s32 %s136, 1
    %s138 = scalar_select %p135, %s136, %s137
    %p141 = pneg %p135
    %p142 = scmp.eq.s32.totalorder %s10, 7
    %p143 = por %p141, %p142
    %p144 = scmp.ne.s32.totalorder %s136, %s139
    %p145 = scmp.eq.s32.totalorder %s10, 0
    %p146 = por %p144, %p145
    %p147 = scmp.ne.s32.totalorder %s136, %s139
    %p148 = scmp.eq.s32.totalorder %s15, 7
    %p149 = por %p147, %p148
    %p150 = scmp.ne.s32.totalorder %s139, %s140
    %p151 = scmp.eq.s32.totalorder %s15, 0
    %p152 = por %p150, %p151
    %p153 = scmp.ne.s32.totalorder %s139, %s140
    %p154 = scmp.eq.s32.totalorder %s16, 7
    %p155 = por %p153, %p154
    %p157 = scmp.ne.s32.totalorder %s140, %s156
    %p158 = scmp.eq.s32.totalorder %s16, 0
    %p159 = por %p157, %p158
    %p160 = scmp.le.s32.totalorder 1, %s10
    %p161 = scmp.lt.s32.totalorder %s10, 9
    %p162 = pnand %p160, %p161
    %p163 = pneg %p162
    // Predicated region
    $region9: #{trans_conv_block.1} parent=5 // pred_check
      _
    $region10: #{trans_conv_block.1} parent=5 // pred_check_branch
      %165 = sbr.rel (%p162) target = $region12
    $region11: #{trans_conv_block.1} parent=5 // pred_region
      %s166 = ssub.s32 %s10, 1
      // Predicated region
      $region13: #{trans_conv_block.1} parent=11 // pred_check
        %p167 = pneg %p103
      $region14: #{trans_conv_block.1} parent=11 // pred_check_branch
        %169 = sbr.rel (%p167) target = $region16
      $region15: #{trans_conv_block.1} parent=11 // pred_region
        _
      $region16: #{trans_conv_block.1} parent=11 // pred_fallthru
        _
      // Predicated region
      $region17: #{trans_conv_block.1} parent=11 // pred_check
        %p170 = pneg %p124
      $region18: #{trans_conv_block.1} parent=11 // pred_check_branch
        %172 = sbr.rel (%p170) target = $region20
      $region19: #{trans_conv_block.1} parent=11 // pred_region
        _
      $region20: #{trans_conv_block.1} parent=11 // pred_fallthru
        _
    $region12: #{trans_conv_block.1} parent=5 // pred_fallthru
      _
    %p173 = scmp.lt.s32.totalorder %s10, 8
    // Predicated region
    $region21: #{trans_conv_block.1} parent=5 // pred_check
      %p174 = pneg %p173
    $region22: #{trans_conv_block.1} parent=5 // pred_check_branch
      %176 = sbr.rel (%p174) target = $region24
    $region23: #{trans_conv_block.1} parent=5 // pred_region
      // Predicated region
      $region25: #{trans_conv_block.1} parent=23 // pred_check
        %p177 = pneg %p44
      $region26: #{trans_conv_block.1} parent=23 // pred_check_branch
        %179 = sbr.rel (%p177) target = $region28
      $region27: #{trans_conv_block.1} parent=23 // pred_region
        %s180 = smul.u32 4, %s18
        %s181 = ssub.s32 17, %s180
        %p182 = scmp.lt.s32.totalorder %s181, 4
        %s183 = scalar_select %p182, %s181, 4
        %s184 = smul.u32 128, %s183
        %s185 = smul.u32 %s184, 3
        %p186 = scmp.lt.s32.totalorder %s17, 1
        %s187 = scalar_select %p186, %s17, 1
        %p188 = scmp.lt.s32.totalorder %s180, 16
        %s189 = scalar_select %p188, %s180, 16
        %s190 = smul.addr %s189, 3
        %s191 = smul.addr %s187, 51
        %s192 = sadd.s32 %s190, %s191
        %s193 = smul.addr %s192, 8
        %s194 = scalar_lea.vmem %s0, %s193
        %s195 = smul.u32 4, %s18
        %s196 = ssub.s32 17, %s195
        %p197 = scmp.lt.s32.totalorder %s196, 4
        %s198 = scalar_select %p197, %s196, 4
        %s199 = smul.u32 128, %s198
        %s200 = smul.u32 %s199, 3
      $region28: #{trans_conv_block.1} parent=23 // pred_fallthru
        _
      // Predicated region
      $region29: #{trans_conv_block.1} parent=23 // pred_check
        %p201 = pneg %p76
      $region30: #{trans_conv_block.1} parent=23 // pred_check_branch
        %203 = sbr.rel (%p201) target = $region32
      $region31: #{trans_conv_block.1} parent=23 // pred_region
        %s204 = sadd.s32 %s18, 1
        %s205 = smul.u32 %s204, 4
        %p206 = scmp.lt.s32.totalorder %s17, 1
        %s207 = scalar_select %p206, %s17, 1
        %p208 = scmp.lt.s32.totalorder %s205, 16
        %s209 = scalar_select %p208, %s205, 16
        %s210 = smul.addr %s209, 3
        %s211 = smul.addr %s207, 51
        %s212 = sadd.s32 %s210, %s211
        %s213 = smul.addr %s212, 8
        %s214 = scalar_lea.vmem %s1, %s213
        %s215 = sadd.s32 %s18, 1
        %s216 = smul.u32 %s215, 4
      $region32: #{trans_conv_block.1} parent=23 // pred_fallthru
        _
    $region24: #{trans_conv_block.1} parent=5 // pred_fallthru
      _
    %p217 = scmp.le.s32.totalorder 1, %s10
    %p218 = scmp.lt.s32.totalorder %s10, 9
    %p219 = pnand %p217, %p218
    %p220 = pneg %p219
    // Predicated region
    $region33: #{trans_conv_block.1} parent=5 // pred_check
      _
    $region34: #{trans_conv_block.1} parent=5 // pred_check_branch
      %222 = sbr.rel (%p219) target = $region36
    $region35: #{trans_conv_block.1} parent=5 // pred_region
      %s223 = ssub.s32 %s10, 1
      %s224 = smul.u32 4, %s20
      %s225 = ssub.s32 17, %s224
      %p226 = scmp.lt.s32.totalorder %s225, 4
      %s227 = scalar_select %p226, %s225, 4
      %s228 = smul.u32 128, %s227
      %s229 = smul.u32 %s228, 3
      %p230 = scmp.lt.s32.totalorder %s19, 1
      %s231 = scalar_select %p230, %s19, 1
      %p232 = scmp.lt.s32.totalorder %s224, 16
      %s233 = scalar_select %p232, %s224, 16
      %s234 = smul.addr %s233, 3
      %s235 = smul.addr %s231, 51
      %s236 = sadd.s32 %s234, %s235
      %s237 = smul.addr %s236, 8
      %s238 = scalar_lea.vmem %s0, %s237
      %p239 = pneg %p50
      %p240 = pneg %p47
      %s241 = sadd.s32 %s20, 1
      %s242 = smul.u32 %s241, 4
      %p243 = scmp.lt.s32.totalorder %s19, 1
      %s244 = scalar_select %p243, %s19, 1
      %p245 = scmp.lt.s32.totalorder %s242, 16
      %s246 = scalar_select %p245, %s242, 16
      %s247 = smul.addr %s246, 3
      %s248 = smul.addr %s244, 51
      %s249 = sadd.s32 %s247, %s248
      %s250 = smul.addr %s249, 8
      %s251 = scalar_lea.vmem %s1, %s250
      %p252 = pneg %p82
      %p253 = pneg %p79
      %p254 = pneg %p103
      %p255 = pneg %p100
      %p256 = pneg %p124
      %p257 = pneg %p121
      %p258 = pneg %p152
      %p259 = pneg %p149
      %s260 = smul.u32 4, %s20
      %p261 = scmp.lt.s32.totalorder %s19, 1
      %s262 = scalar_select %p261, %s19, 1
      %p263 = scmp.lt.s32.totalorder %s260, 15
      %s264 = scalar_select %p263, %s260, 15
      %s265 = smul.addr %s264, 2
      %s266 = smul.addr %s262, 32
      %s267 = sadd.s32 %s265, %s266
      %s268 = smul.addr %s267, 8
      %s269 = scalar_lea.vmem %s4, %s268
      %s270 = smul.u32 4, %s20
      %s271 = ssub.s32 17, %s270
      %p272 = scmp.lt.s32.totalorder %s271, 4
      %s273 = scalar_select %p272, %s271, 4
      %s274 = smul.u32 128, %s273
      %s275 = smul.u32 %s274, 3
      %p276 = scmp.lt.s32.totalorder %s19, 1
      %s277 = scalar_select %p276, %s19, 1
      %p278 = scmp.lt.s32.totalorder %s270, 16
      %s279 = scalar_select %p278, %s270, 16
      %s280 = smul.addr %s279, 3
      %s281 = smul.addr %s277, 51
      %s282 = sadd.s32 %s280, %s281
      %s283 = smul.addr %s282, 8
      %s284 = scalar_lea.vmem %s0, %s283
      %s285 = smul.u32 4, %s20
      %s286 = ssub.s32 17, %s285
      %p287 = scmp.lt.s32.totalorder %s286, 4
      %s288 = scalar_select %p287, %s286, 4
      %s289 = smul.u32 128, %s288
      %s290 = smul.u32 %s289, 3
      %s291 = sadd.s32 %s20, 1
      %s292 = smul.u32 %s291, 4
      %p293 = scmp.lt.s32.totalorder %s19, 1
      %s294 = scalar_select %p293, %s19, 1
      %p295 = scmp.lt.s32.totalorder %s292, 16
      %s296 = scalar_select %p295, %s292, 16
      %s297 = smul.addr %s296, 3
      %s298 = smul.addr %s294, 51
      %s299 = sadd.s32 %s297, %s298
      %s300 = smul.addr %s299, 8
      %s301 = scalar_lea.vmem %s1, %s300
      %s302 = sadd.s32 %s20, 1
      %s303 = smul.u32 %s302, 4
      %s304 = smul.u32 4, %s20
      %p305 = scmp.lt.s32.totalorder %s19, 1
      %s306 = scalar_select %p305, %s19, 1
      %p307 = scmp.lt.s32.totalorder %s304, 15
      %s308 = scalar_select %p307, %s304, 15
      %s309 = smul.addr %s308, 2
      %s310 = smul.addr %s306, 32
      %s311 = sadd.s32 %s309, %s310
      %s312 = smul.addr %s311, 8
      %s313 = scalar_lea.vmem %s4, %s312
      %s314 = smul.u32 4, %s20
      %v315 = vld [vmem:[%s284] sm:$0xff]
      %v316 = vld [vmem:[%s284 + $0x8] sm:$0xff]
      %v317 = vld [vmem:[%s284 + $0x10] sm:$0x1]
      %v318 = vld [vmem:[%s284 + $0x18] sm:$0xff]
      %v319 = vld [vmem:[%s284 + $0x20] sm:$0xff]
      %v320 = vld [vmem:[%s284 + $0x28] sm:$0x1]
      %v321 = vld [vmem:[%s284 + $0x30] sm:$0xff]
      %v322 = vld [vmem:[%s284 + $0x38] sm:$0xff]
      %v323 = vld [vmem:[%s284 + $0x40] sm:$0x1]
      %v324 = vld [vmem:[%s284 + $0x48] sm:$0xff]
      %v325 = vld [vmem:[%s284 + $0x50] sm:$0xff]
      %v326 = vld [vmem:[%s284 + $0x58] sm:$0x1]
      %v327 = vld [vmem:[%s301] sm:$0xff]
      %v328 = vld [vmem:[%s301 + $0x8] sm:$0xff]
      %v329 = vld [vmem:[%s301 + $0x10] sm:$0x1]
      %vm342 = vcmask 1046528
      %v343 = vrot.slane %v315, 1
      %v344 = vrot.slane %v316, 1
      %v345 = vsel %vm342, %v343, %v344
      %v346 = vrot.slane %v317, 1
      %v347 = vsel %vm342, %v344, %v346
      %v348 = vrot.slane %v318, 1
      %v349 = vrot.slane %v319, 1
      %v350 = vsel %vm342, %v348, %v349
      %v351 = vrot.slane %v320, 1
      %v352 = vsel %vm342, %v349, %v351
      %v353 = vrot.slane %v321, 1
      %v354 = vrot.slane %v322, 1
      %v355 = vsel %vm342, %v353, %v354
      %v356 = vrot.slane %v323, 1
      %v357 = vsel %vm342, %v354, %v356
      %v358 = vrot.slane %v324, 1
      %v359 = vrot.slane %v325, 1
      %v360 = vsel %vm342, %v358, %v359
      %v361 = vrot.slane %v326, 1
      %v362 = vsel %vm342, %v359, %v361
      %363 = vrot.lane.b32.xlu0 %v345, 4
      %v364 = vpop.permute.xlu0 %363
      %365 = vrot.lane.b32.xlu0 %v347, 4
      %v366 = vpop.permute.xlu0 %365
      %367 = vrot.lane.b32.xlu0 %v350, 4
      %v368 = vpop.permute.xlu0 %367
      %369 = vrot.lane.b32.xlu0 %v352, 4
      %v370 = vpop.permute.xlu0 %369
      %371 = vrot.lane.b32.xlu0 %v355, 4
      %v372 = vpop.permute.xlu0 %371
      %373 = vrot.lane.b32.xlu0 %v357, 4
      %v374 = vpop.permute.xlu0 %373
      %375 = vrot.lane.b32.xlu0 %v360, 4
      %v376 = vpop.permute.xlu0 %375
      %377 = vrot.lane.b32.xlu0 %v362, 4
      %v378 = vpop.permute.xlu0 %377
      %389 = vrot.lane.b32.xlu0 %v318, 8
      %v390 = vpop.permute.xlu0 %389
      %391 = vrot.lane.b32.xlu0 %v319, 8
      %v392 = vpop.permute.xlu0 %391
      %393 = vrot.lane.b32.xlu0 %v321, 8
      %v394 = vpop.permute.xlu0 %393
      %395 = vrot.lane.b32.xlu0 %v322, 8
      %v396 = vpop.permute.xlu0 %395
      %397 = vrot.lane.b32.xlu0 %v324, 8
      %v398 = vpop.permute.xlu0 %397
      %399 = vrot.lane.b32.xlu0 %v325, 8
      %v400 = vpop.permute.xlu0 %399
      %401 = vrot.lane.b32.xlu0 %v327, 8
      %v402 = vpop.permute.xlu0 %401
      %403 = vrot.lane.b32.xlu0 %v328, 8
      %v404 = vpop.permute.xlu0 %403
      %v414 = vrot.slane %v327, 1
      %v415 = vrot.slane %v328, 1
      %v416 = vsel %vm342, %v414, %v415
      %v417 = vrot.slane %v329, 1
      %v418 = vsel %vm342, %v415, %v417
      %419 = vrot.lane.b32.xlu0 %v350, 12
      %v420 = vpop.permute.xlu0 %419
      %421 = vrot.lane.b32.xlu0 %v352, 12
      %v422 = vpop.permute.xlu0 %421
      %423 = vrot.lane.b32.xlu0 %v355, 12
      %v424 = vpop.permute.xlu0 %423
      %425 = vrot.lane.b32.xlu0 %v357, 12
      %v426 = vpop.permute.xlu0 %425
      %427 = vrot.lane.b32.xlu0 %v360, 12
      %v428 = vpop.permute.xlu0 %427
      %429 = vrot.lane.b32.xlu0 %v362, 12
      %v430 = vpop.permute.xlu0 %429
      %431 = vrot.lane.b32.xlu0 %v416, 12
      %v432 = vpop.permute.xlu0 %431
      %433 = vrot.lane.b32.xlu0 %v418, 12
      %v434 = vpop.permute.xlu0 %433
      %vm443 = vcmask 31744
      %v444 = vsel %vm443, %v315, %v364
      %v445 = vsel %vm443, %v316, %v366
      %v446 = vsel %vm443, %v318, %v368
      %v447 = vsel %vm443, %v319, %v370
      %v448 = vsel %vm443, %v321, %v372
      %v449 = vsel %vm443, %v322, %v374
      %v450 = vsel %vm443, %v324, %v376
      %v451 = vsel %vm443, %v325, %v378
      %vm452 = vcmask 64512
      %v453 = vsel %vm452, %v444, %v390
      %v454 = vsel %vm452, %v445, %v392
      %v455 = vsel %vm452, %v446, %v394
      %v456 = vsel %vm452, %v447, %v396
      %v457 = vsel %vm452, %v448, %v398
      %v458 = vsel %vm452, %v449, %v400
      %v459 = vsel %vm452, %v450, %v402
      %v460 = vsel %vm452, %v451, %v404
      %vm461 = vcmask 97280
      %v462 = vsel %vm461, %v453, %v420
      %v463 = vsel %vm461, %v454, %v422
      %v464 = vsel %vm461, %v455, %v424
      %v465 = vsel %vm461, %v456, %v426
      %v466 = vsel %vm461, %v457, %v428
      %v467 = vsel %vm461, %v458, %v430
      %v468 = vsel %vm461, %v459, %v432
      %v469 = vsel %vm461, %v460, %v434
      %v470 = vld [vmem:[%s2] sm:$0xff]
      %v471 = vld [vmem:[%s2 + $0x8] sm:$0xff]
      %vm472 = vcmask 130048
      %v474 = vsel %vm472, %v462, 0
      %v477 = vsel %vm472, %v463, 0
      %v480 = vsel %vm472, %v464, 0
      %v483 = vsel %vm472, %v465, 0
      %v486 = vsel %vm472, %v466, 0
      %v489 = vsel %vm472, %v467, 0
      %v492 = vsel %vm472, %v468, 0
      %v495 = vsel %vm472, %v469, 0
      %497 = vmatprep.subr.mxu0 0.0
      %498 = vmatpush1.msra.mxu0 0.0
      %499 = vmatprep.subr.mxu0 0.0
      %500 = vmatpush1.msra.mxu0 0.0
      %501 = vmatprep.subr.mxu0 0.0
      %502 = vmatpush1.msra.mxu0 0.0
      %503 = vmatprep.subr.mxu0 0.0
      %504 = vmatpush1.msra.mxu0 0.0
      %505 = vmatprep.subr.mxu0 0.0
      %506 = vmatpush1.msra.mxu0 0.0
      %507 = vmatprep.subr.mxu0 0.0
      %508 = vmatpush1.msra.mxu0 0.0
      %509 = vmatprep.subr.mxu0 0.0
      %510 = vmatpush1.msra.mxu0 0.0
      %511 = vmatprep.subr.mxu0 0.0
      %512 = vmatpush1.msra.mxu0 0.0
      %513 = vmatprep.subr.mxu0 0.0
      %514 = vmatpush1.msra.mxu0 0.0
      %515 = vmatprep.subr.mxu0 0.0
      %516 = vmatpush1.msra.mxu0 0.0
      %517 = vmatprep.subr.mxu0 0.0
      %518 = vmatpush1.msra.mxu0 0.0
      %519 = vmatprep.subr.mxu0 0.0
      %520 = vmatpush1.msra.mxu0 0.0
      %521 = vmatprep.subr.mxu0 0.0
      %522 = vmatpush1.msra.mxu0 0.0
      %523 = vmatprep.subr.mxu0 0.0
      %524 = vmatpush1.msra.mxu0 0.0
      %525 = vmatprep.subr.mxu0 0.0
      %526 = vmatpush1.msra.mxu0 %v471
      %527 = vmatprep.subr.mxu0 0.0
      %528 = vmatpush1.msra.mxu0 %v470
      %529 = vmatprep.subr.mxu0 0.0
      %530 = vmatpush2.msra.mxu0 0.0
      %531 = vmatprep.subr.mxu0 0.0
      %532 = vmatpush2.msra.mxu0 0.0
      %533 = vmatprep.subr.mxu0 0.0
      %534 = vmatpush2.msra.mxu0 0.0
      %535 = vmatprep.subr.mxu0 0.0
      %536 = vmatpush2.msra.mxu0 0.0
      %537 = vmatprep.subr.mxu0 0.0
      %538 = vmatpush2.msra.mxu0 0.0
      %539 = vmatprep.subr.mxu0 0.0
      %540 = vmatpush2.msra.mxu0 0.0
      %541 = vmatprep.subr.mxu0 0.0
      %542 = vmatpush2.msra.mxu0 0.0
      %543 = vmatprep.subr.mxu0 0.0
      %544 = vmatpush2.msra.mxu0 0.0
      %545 = vmatprep.subr.mxu0 0.0
      %546 = vmatpush2.msra.mxu0 0.0
      %547 = vmatprep.subr.mxu0 0.0
      %548 = vmatpush2.msra.mxu0 0.0
      %549 = vmatprep.subr.mxu0 0.0
      %550 = vmatpush2.msra.mxu0 0.0
      %551 = vmatprep.subr.mxu0 0.0
      %552 = vmatpush2.msra.mxu0 0.0
      %553 = vmatprep.subr.mxu0 0.0
      %554 = vmatpush2.msra.mxu0 0.0
      %555 = vmatprep.subr.mxu0 0.0
      %556 = vmatpush2.msra.mxu0 0.0
      %557 = vmatprep.subr.mxu0 0.0
      %558 = vmatpush2.msra.mxu0 0.0
      %559 = vmatprep.subr.mxu0 0.0
      %560 = vmatpush2.msra.mxu0 0.0
      %561 = vmatprep.mubr.f32.mxu0 0.0
      %562 = vmatmul.mubr.f32.gmra.mxu0 %v474
      %v563 = vpop.f32.mrf.mxu0
      %v564 = vadd.f32 0.0, %v563
      %v565 = vpop.f32.mrf.mxu0
      %566 = vmatprep.mubr.f32.mxu0 0.0
      %567 = vmatmul.mubr.f32.gmra.mxu0 %v477
      %v568 = vpop.f32.mrf.mxu0
      %v569 = vadd.f32 0.0, %v568
      %v570 = vpop.f32.mrf.mxu0
      %571 = vmatprep.mubr.f32.mxu0 0.0
      %572 = vmatmul.mubr.f32.gmra.mxu0 %v480
      %v573 = vpop.f32.mrf.mxu0
      %v574 = vadd.f32 0.0, %v573
      %v575 = vpop.f32.mrf.mxu0
      %576 = vmatprep.mubr.f32.mxu0 0.0
      %577 = vmatmul.mubr.f32.gmra.mxu0 %v483
      %v578 = vpop.f32.mrf.mxu0
      %v579 = vadd.f32 0.0, %v578
      %v580 = vpop.f32.mrf.mxu0
      %581 = vmatprep.mubr.f32.mxu0 0.0
      %582 = vmatmul.mubr.f32.gmra.mxu0 %v486
      %v583 = vpop.f32.mrf.mxu0
      %v584 = vadd.f32 0.0, %v583
      %v585 = vpop.f32.mrf.mxu0
      %586 = vmatprep.mubr.f32.mxu0 0.0
      %587 = vmatmul.mubr.f32.gmra.mxu0 %v489
      %v588 = vpop.f32.mrf.mxu0
      %v589 = vadd.f32 0.0, %v588
      %v590 = vpop.f32.mrf.mxu0
      %591 = vmatprep.mubr.f32.mxu0 0.0
      %592 = vmatmul.mubr.f32.gmra.mxu0 %v492
      %v593 = vpop.f32.mrf.mxu0
      %v594 = vadd.f32 0.0, %v593
      %v595 = vpop.f32.mrf.mxu0
      %596 = vmatprep.mubr.f32.mxu0 0.0
      %597 = vmatmul.mubr.f32.gmra.mxu0 %v495
      %v598 = vpop.f32.mrf.mxu0
      %v599 = vadd.f32 0.0, %v598
      %v600 = vpop.f32.mrf.mxu0
      %601 = vdwg.mxu0
      %v602 = vld [vmem:[%s3] sm:$0x1]
      %v604 = vlaneseq
      %v605 = vshrl.u32 %v604, 7
      %v606 = vsub.s32 0, %v605
      %v607 = vrot.slane %v602, %v606
      %v609 = vadd.f32 %v564, %v607
      %v610 = vadd.f32 %v569, %v607
      %v611 = vadd.f32 %v574, %v607
      %v612 = vadd.f32 %v579, %v607
      %v613 = vadd.f32 %v584, %v607
      %v614 = vadd.f32 %v589, %v607
      %v615 = vadd.f32 %v594, %v607
      %v616 = vadd.f32 %v599, %v607
      %vm617 = vcmask 261120
      %618 = vst.msk [vmem:[%s313] sm:$0xff] %vm617, %v609
      %619 = vst.msk [vmem:[%s313 + $0x8] sm:$0xff] %vm617, %v610
      %620 = vst.msk [vmem:[%s313 + $0x10] sm:$0xff] %vm617, %v611
      %621 = vst.msk [vmem:[%s313 + $0x18] sm:$0xff] %vm617, %v612
      %622 = vst.msk [vmem:[%s313 + $0x20] sm:$0xff] %vm617, %v613
      %623 = vst.msk [vmem:[%s313 + $0x28] sm:$0xff] %vm617, %v614
      %624 = vst.msk [vmem:[%s313 + $0x30] sm:$0xff] %vm617, %v615
      %625 = vst.msk [vmem:[%s313 + $0x38] sm:$0xff] %vm617, %v616
      %s626 = smul.u32 4, %s20
      %p627 = scmp.lt.s32.totalorder %s19, 1
      %s628 = scalar_select %p627, %s19, 1
      %p629 = scmp.lt.s32.totalorder %s626, 15
      %s630 = scalar_select %p629, %s626, 15
      %s631 = smul.addr %s630, 2
      %s632 = smul.addr %s628, 32
      %s633 = sadd.s32 %s631, %s632
      %s634 = smul.addr %s633, 8
      %s635 = scalar_lea.vmem %s4, %s634
      // Predicated region
      $region37: #{trans_conv_block.1} parent=35 // pred_check
        %p636 = pneg %p149
      $region38: #{trans_conv_block.1} parent=35 // pred_check_branch
        %638 = sbr.rel (%p636) target = $region40
      $region39: #{trans_conv_block.1} parent=35 // pred_region
        %s639 = smul.u32 4, %s20
      $region40: #{trans_conv_block.1} parent=35 // pred_fallthru
        _
    $region36: #{trans_conv_block.1} parent=5 // pred_fallthru
      _
    %p640 = scmp.le.s32.totalorder 2, %s10
    // Predicated region
    $region41: #{trans_conv_block.1} parent=5 // pred_check
      %p641 = pneg %p640
    $region42: #{trans_conv_block.1} parent=5 // pred_check_branch
      %643 = sbr.rel (%p641) target = $region44
    $region43: #{trans_conv_block.1} parent=5 // pred_region
      %s644 = ssub.s32 %s10, 2
      // Predicated region
      $region45: #{trans_conv_block.1} parent=43 // pred_check
        %p645 = pneg %p155
      $region46: #{trans_conv_block.1} parent=43 // pred_check_branch
        %647 = sbr.rel (%p645) target = $region48
      $region47: #{trans_conv_block.1} parent=43 // pred_region
        %s648 = smul.u32 4, %s22
        %p649 = scmp.lt.s32.totalorder %s21, 1
        %s650 = scalar_select %p649, %s21, 1
        %p651 = scmp.lt.s32.totalorder %s648, 15
        %s652 = scalar_select %p651, %s648, 15
        %s653 = smul.addr %s652, 2
        %s654 = smul.addr %s650, 32
        %s655 = sadd.s32 %s653, %s654
        %s656 = smul.addr %s655, 8
        %s657 = scalar_lea.vmem %s4, %s656
      $region48: #{trans_conv_block.1} parent=43 // pred_fallthru
        _
    $region44: #{trans_conv_block.1} parent=5 // pred_fallthru
      _
  $region6: #{trans_conv_block.1} parent=0 // loop_footer
    %s14 = sadd.s32 1, %s10
  $region7: #{trans_conv_block.1} parent=0 // loop_footer_branch
    %9 = sbr.rel target = $region3
  $region8: #{trans_conv_block.1} parent=0 // loop_exit
    _

</llo_original>
